<compile_context>
chip_gen: v7x
topology: tpu7x:2x2x1
jax: 0.10.0
libtpu: 0.0.40
codegen_flags: <defaults>
</compile_context>

<pallas_src>
import math
import functools

import jax
import jax.numpy as jnp
from jax import lax
from jax.experimental import pallas as pl
from jax.experimental.pallas import tpu as pltpu


# ----------------------------------------------------------------------------
# small helpers
# ----------------------------------------------------------------------------
def _cdiv(a, b):
    return -(-a // b)


def _round_up(a, b):
    return _cdiv(a, b) * b


def _pad_axis(x, axis, new_size):
    pad = new_size - x.shape[axis]
    if pad == 0:
        return x
    widths = [(0, 0)] * x.ndim
    widths[axis] = (0, pad)
    return jnp.pad(x, widths)


_VMEM_LIMIT = 32 * 1024 * 1024


# ----------------------------------------------------------------------------
# Pallas kernel 1: tiled matmul (text-encoder FFN) with fused bias/act/residual
# ----------------------------------------------------------------------------
def _mm_kernel(*refs, act, use_res):
    x_ref, w_ref, b_ref = refs[0], refs[1], refs[2]
    i = 3
    r_ref = None
    if use_res:
        r_ref = refs[i]
        i += 1
    o_ref, acc_ref = refs[i], refs[i + 1]

    k = pl.program_id(2)

    @pl.when(k == 0)
    def _():
        acc_ref[...] = jnp.zeros_like(acc_ref)

    acc_ref[...] += jnp.dot(x_ref[...], w_ref[...],
                            preferred_element_type=jnp.float32)

    @pl.when(k == pl.num_programs(2) - 1)
    def _():
        y = acc_ref[...] + b_ref[...]
        if act == "relu":
            y = jnp.maximum(y, 0.0)
        if use_res:
            y = y + r_ref[...].astype(jnp.float32)
        o_ref[...] = y.astype(o_ref.dtype)


def pallas_matmul(x, w, b, n_out=None, residual=None, act="none",
                  out_dtype=jnp.float32, tm_cap=256, tn_cap=256, tk_cap=512):
    """y = act(x @ w + b) [+ residual]; bf16 MXU operands, f32 accumulation.

    Weights are expected pre-cast to bf16 and lane-padded (prepare_params); any
    missing padding is applied here only when actually needed (trace-time check).
    """
    M, K = x.shape
    Kw, N = w.shape
    assert Kw == K
    if n_out is None:
        n_out = N

    if M <= tm_cap:
        tm, Mp = M, M
    else:
        tm, Mp = tm_cap, _round_up(M, tm_cap)
    if K <= tk_cap:
        tk, Kp = K, K
    else:
        tk, Kp = tk_cap, _round_up(K, tk_cap)
    Np = _round_up(N, 128)
    if Np <= tn_cap:
        tn = Np
    else:
        tn, Np = tn_cap, _round_up(N, tn_cap)

    xp = x if x.dtype == jnp.bfloat16 else x.astype(jnp.bfloat16)
    if (Mp, Kp) != (M, K):
        xp = jnp.pad(xp, ((0, Mp - M), (0, Kp - K)))
    wp = w if w.dtype == jnp.bfloat16 else w.astype(jnp.bfloat16)
    if wp.shape != (Kp, Np):
        wp = jnp.pad(wp, ((0, Kp - K), (0, Np - N)))
    bp = b.astype(jnp.float32).reshape(1, -1)
    if bp.shape[1] != Np:
        bp = jnp.pad(bp, ((0, 0), (0, Np - bp.shape[1])))

    use_res = residual is not None
    args = [xp, wp, bp]
    in_specs = [
        pl.BlockSpec((tm, tk), lambda i, j, k: (i, k)),
        pl.BlockSpec((tk, tn), lambda i, j, k: (k, j)),
        pl.BlockSpec((1, tn), lambda i, j, k: (0, j)),
    ]
    if use_res:
        rp = residual.astype(jnp.bfloat16)      # halve residual DMA bytes
        if rp.shape != (Mp, Np):
            rp = jnp.pad(rp, ((0, Mp - rp.shape[0]), (0, Np - rp.shape[1])))
        args.append(rp)
        in_specs.append(pl.BlockSpec((tm, tn), lambda i, j, k: (i, j)))

    out = pl.pallas_call(
        functools.partial(_mm_kernel, act=act, use_res=use_res),
        out_shape=jax.ShapeDtypeStruct((Mp, Np), out_dtype),
        grid=(Mp // tm, Np // tn, Kp // tk),
        in_specs=in_specs,
        out_specs=pl.BlockSpec((tm, tn), lambda i, j, k: (i, j)),
        scratch_shapes=[pltpu.VMEM((tm, tn), jnp.float32)],
        compiler_params=pltpu.CompilerParams(
            dimension_semantics=("parallel", "parallel", "arbitrary"),
            vmem_limit_bytes=_VMEM_LIMIT),
    )(*args)
    return out[:M, :n_out]


# ----------------------------------------------------------------------------
# Pallas kernel 2: fused conv-stack module (pre-proj -> L k-tap convs -> head)
# NCT layout; time on the lane axis; taps via pltpu.roll; activation VMEM-resident.
# ----------------------------------------------------------------------------
def _conv_stack_kernel(*refs, L, K, pad, residual_mode, cond_kind, has_pre):
    idx = 0
    x_ref = refs[idx]; idx += 1
    pw_ref = pb_ref = None
    if has_pre:
        pw_ref = refs[idx]; idx += 1
        pb_ref = refs[idx]; idx += 1
    w_ref = refs[idx]; idx += 1
    b_ref = refs[idx]; idx += 1
    m_ref = refs[idx]; idx += 1
    c_ref = cw_ref = cb_ref = None
    if cond_kind == "row":
        c_ref = refs[idx]; idx += 1
    elif cond_kind == "scalar":
        c_ref = refs[idx]; idx += 1
        cw_ref = refs[idx]; idx += 1
        cb_ref = refs[idx]; idx += 1
    ow_ref = refs[idx]; idx += 1
    ob_ref = refs[idx]; idx += 1
    o_ref = refs[idx]

    mask = m_ref[0]                                   # [1, Tp] f32
    x = x_ref[0]                                      # [Cin, Tp]

    if has_pre:                                       # fused 1x1 pre-projection
        cur = jnp.dot(pw_ref[...], x.astype(jnp.bfloat16),
                      preferred_element_type=jnp.float32) + pb_ref[...]
    else:
        cur = x.astype(jnp.float32)
    if cond_kind == "row":                            # per-utterance conditioning
        cur = cur + c_ref[0]
    elif cond_kind == "scalar":                       # per-frame scalar conditioning
        cur = cur + c_ref[0] * cw_ref[...] + cb_ref[...]
    cur = cur * mask

    Tp = cur.shape[1]
    t_idx = lax.broadcasted_iota(jnp.int32, (1, Tp), 1)
    tap_masks = []                                    # zero-fill "same"-padding borders
    for tap in range(K):
        s = pad - tap
        valid = (t_idx >= max(s, 0)) & (t_idx < Tp + min(s, 0))
        tap_masks.append(valid.astype(jnp.bfloat16))

    for l in range(L):
        cur_b = cur.astype(jnp.bfloat16)              # one cast per layer
        pieces = []
        for tap in range(K):
            s = pad - tap
            if s == 0:
                pieces.append(cur_b)
            else:
                xs = pltpu.roll(cur_b, shift=s % Tp, axis=1)   # XLU lane rotation
                pieces.append(xs * tap_masks[tap])
        xcat = jnp.concatenate(pieces, axis=0)        # [K*H, Tp] bf16
        y = jnp.dot(w_ref[l], xcat, preferred_element_type=jnp.float32) + b_ref[l]
        y = jnp.maximum(y, 0.0)
        if residual_mode:
            cur = (cur + y) * mask
        else:
            cur = y * mask

    head = jnp.dot(ow_ref[...], cur.astype(jnp.bfloat16),
                   preferred_element_type=jnp.float32) + ob_ref[...]
    o_ref[0] = (head * mask).astype(o_ref.dtype)


def pallas_conv_stack_head(x_bct, mask_b1t, stack, *, residual_mode=False,
                           pre=None, cond_row=None, cond_scalar=None):
    """Fused module: [1x1 pre] -> L x (K-tap conv + relu + mask [+res]) -> 1x1 head.

    x_bct: [B, Cin, T] (NCT);  mask_b1t: [B, 1, T];  returns head output [B, Nout, T].
    """
    B, Cin, T = x_bct.shape
    Tp = _round_up(T, 128)                            # lane-dense time axis
    L, H, KH = stack["wt"].shape
    Kt, kpad = stack["K"], stack["pad"]
    Nout = stack["owt"].shape[0]

    xp = _pad_axis(x_bct.astype(jnp.float32), 2, Tp)
    mp = _pad_axis(mask_b1t.astype(jnp.float32), 2, Tp)

    args = [xp]
    in_specs = [pl.BlockSpec((1, Cin, Tp), lambda b: (b, 0, 0))]
    has_pre = pre is not None
    if has_pre:
        args += [pre["wt"], pre["b"]]
        in_specs += [pl.BlockSpec((H, Cin), lambda b: (0, 0)),
                     pl.BlockSpec((H, 1), lambda b: (0, 0))]
    args += [stack["wt"], stack["b"], mp]
    in_specs += [pl.BlockSpec((L, H, KH), lambda b: (0, 0, 0)),
                 pl.BlockSpec((L, H, 1), lambda b: (0, 0, 0)),
                 pl.BlockSpec((1, 1, Tp), lambda b: (b, 0, 0))]
    cond_kind = "none"
    if cond_row is not None:
        cond_kind = "row"
        args.append(cond_row.astype(jnp.float32).reshape(B, H, 1))
        in_specs.append(pl.BlockSpec((1, H, 1), lambda b: (b, 0, 0)))
    elif cond_scalar is not None:
        cond_kind = "scalar"
        cvals, cw, cb = cond_scalar
        args += [_pad_axis(cvals.astype(jnp.float32), 2, Tp), cw, cb]
        in_specs += [pl.BlockSpec((1, 1, Tp), lambda b: (b, 0, 0)),
                     pl.BlockSpec((H, 1), lambda b: (0, 0)),
                     pl.BlockSpec((H, 1), lambda b: (0, 0))]
    args += [stack["owt"], stack["ob"]]
    in_specs += [pl.BlockSpec((Nout, H), lambda b: (0, 0)),
                 pl.BlockSpec((Nout, 1), lambda b: (0, 0))]

    out = pl.pallas_call(
        functools.partial(_conv_stack_kernel, L=L, K=Kt, pad=kpad,
                          residual_mode=residual_mode, cond_kind=cond_kind,
                          has_pre=has_pre),
        out_shape=jax.ShapeDtypeStruct((B, Nout, Tp), jnp.float32),
        grid=(B,),
        in_specs=in_specs,
        out_specs=pl.BlockSpec((1, Nout, Tp), lambda b: (b, 0, 0)),
        compiler_params=pltpu.CompilerParams(
            dimension_semantics=("parallel",),
            vmem_limit_bytes=_VMEM_LIMIT),
    )(*args)
    return out[:, :, :T]


# ----------------------------------------------------------------------------
# Pallas kernel 3: fused residual-coupling flow (all couplings, one kernel)
# Channel flips are folded into the prepared weights; reverse uses negated post.
# ----------------------------------------------------------------------------
def _flow_kernel(x_ref, pw_ref, qw_ref, qb_ref, c_ref, m_ref, o_ref,
                 *, n_coup, half, H, cond_a_on_even):
    mask = m_ref[0]                                   # [1, Tp]
    x = x_ref[0]                                      # [C, Tp] f32
    A = x[:half, :]
    Bv = x[half:, :]
    c_all = c_ref[0]                                  # [n*H, 1]
    qb_all = qb_ref[...]                              # [n*half, 1]
    for i in range(n_coup):
        cond_is_a = (i % 2 == 0) == cond_a_on_even
        cond = A if cond_is_a else Bv
        g = c_all[i * H:(i + 1) * H, :]
        h = jnp.dot(pw_ref[i], cond.astype(jnp.bfloat16),
                    preferred_element_type=jnp.float32) + g
        h = jnp.maximum(h, 0.0) * mask
        m = jnp.dot(qw_ref[i], h.astype(jnp.bfloat16),
                    preferred_element_type=jnp.float32) \
            + qb_all[i * half:(i + 1) * half, :]
        if cond_is_a:
            Bv = (Bv + m) * mask
        else:
            A = (A + m) * mask
    o_ref[0] = jnp.concatenate([A, Bv], axis=0).astype(o_ref.dtype)


def pallas_flow(x_bct, mask_b1t, flowp, g_vec, reverse=False):
    B, C, T = x_bct.shape
    half = C // 2
    H = flowp["H"]
    n = flowp["n_coup"]
    Tp = _round_up(T, 128)
    pp = flowp["rev" if reverse else "fwd"]
    # speaker conditioning + pre bias folded into one tiny [B, n*H, 1] block
    c = jnp.einsum("bg,ngh->bnh", g_vec.astype(jnp.float32), pp["gw"]) + pp["gb"][None]
    c = c.reshape(B, n * H, 1)

    xp = _pad_axis(x_bct.astype(jnp.float32), 2, Tp)
    mp = _pad_axis(mask_b1t.astype(jnp.float32), 2, Tp)

    out = pl.pallas_call(
        functools.partial(_flow_kernel, n_coup=n, half=half, H=H,
                          cond_a_on_even=(not reverse)),
        out_shape=jax.ShapeDtypeStruct((B, C, Tp), jnp.float32),
        grid=(B,),
        in_specs=[
            pl.BlockSpec((1, C, Tp), lambda b: (b, 0, 0)),
            pl.BlockSpec((n, H, half), lambda b: (0, 0, 0)),
            pl.BlockSpec((n, half, H), lambda b: (0, 0, 0)),
            pl.BlockSpec((n * half, 1), lambda b: (0, 0)),
            pl.BlockSpec((1, n * H, 1), lambda b: (b, 0, 0)),
            pl.BlockSpec((1, 1, Tp), lambda b: (b, 0, 0)),
        ],
        out_specs=pl.BlockSpec((1, C, Tp), lambda b: (b, 0, 0)),
        compiler_params=pltpu.CompilerParams(
            dimension_semantics=("parallel",),
            vmem_limit_bytes=_VMEM_LIMIT),
    )(xp, pp["pw"], pp["qw"], pp["qb"], c, mp)
    return out[:, :, :T]


# ----------------------------------------------------------------------------
# Pallas kernel 4: fused generator (simplified 1x1-conv HiFi-GAN stand-in)
# ----------------------------------------------------------------------------
def _generator_kernel(*refs, n_up):
    z_ref, c_ref, pw_ref = refs[0], refs[1], refs[2]
    qw_ref, qb_ref = refs[3 + 2 * n_up], refs[4 + 2 * n_up]
    o_ref = refs[-1]

    x = jnp.dot(pw_ref[...], z_ref[0].astype(jnp.bfloat16),
                preferred_element_type=jnp.float32) + c_ref[0]
    for i in range(n_up):
        uw, ub = refs[3 + 2 * i], refs[4 + 2 * i]
        x = jnp.dot(uw[...], x.astype(jnp.bfloat16),
                    preferred_element_type=jnp.float32) + ub[...]
        x = jnp.where(x > 0.0, x, 0.1 * x)            # HiFi-GAN lrelu slope 0.1
    y = jnp.dot(qw_ref[...], x.astype(jnp.bfloat16),
                preferred_element_type=jnp.float32) + qb_ref[...]
    o_ref[0] = jnp.tanh(y).astype(o_ref.dtype)


def pallas_generator(z_bct, decp, g_vec):
    # TODO(synk): HiFi-GAN transposed convs + MRF ResBlocks simplified to 1x1 convs;
    # nearest-repeat upsampling therefore commutes with every stage and is applied once
    # on the 1-channel output (no upsampled intermediates in HBM).
    B, H, t = z_bct.shape
    Tp = _round_up(t, 128)
    zp = _pad_axis(z_bct.astype(jnp.float32), 2, Tp)
    C0 = decp["pre_wt"].shape[0]
    c = (g_vec.astype(jnp.float32) @ decp["cond_w"] + decp["cond_b"]
         + decp["pre_b"]).reshape(B, C0, 1)

    args = [zp, c, decp["pre_wt"]]
    in_specs = [pl.BlockSpec((1, H, Tp), lambda b: (b, 0, 0)),
                pl.BlockSpec((1, C0, 1), lambda b: (b, 0, 0)),
                pl.BlockSpec((C0, H), lambda b: (0, 0))]
    rates = []
    for up in decp["ups"]:
        co, ci = up["wt"].shape
        args += [up["wt"], up["b"]]
        in_specs += [pl.BlockSpec((co, ci), lambda b: (0, 0)),
                     pl.BlockSpec((co, 1), lambda b: (0, 0))]
        rates.append(int(up["rate"]))
    c_last = decp["post_wt"].shape[1]
    args += [decp["post_wt"], decp["post_b"]]
    in_specs += [pl.BlockSpec((1, c_last), lambda b: (0, 0)),
                 pl.BlockSpec((1, 1), lambda b: (0, 0))]

    out = pl.pallas_call(
        functools.partial(_generator_kernel, n_up=len(decp["ups"])),
        out_shape=jax.ShapeDtypeStruct((B, 1, Tp), jnp.float32),
        grid=(B,),
        in_specs=in_specs,
        out_specs=pl.BlockSpec((1, 1, Tp), lambda b: (b, 0, 0)),
        compiler_params=pltpu.CompilerParams(
            dimension_semantics=("parallel",),
            vmem_limit_bytes=_VMEM_LIMIT),
    )(*args)
    wav = out[:, :, :t]
    up_total = 1
    for r in rates:
        up_total *= r
    return jnp.repeat(wav, up_total, axis=2)          # [B, 1, t*up_total]


# ----------------------------------------------------------------------------
# Pallas kernel 5: masked KL reduction (mask broadcast in-kernel, SMEM accumulator)
# ----------------------------------------------------------------------------
def _kl_sum_kernel(logs_p_ref, logs_q_ref, z_p_ref, mu_p_ref, mask_ref,
                   o_ref, acc_ref):
    b = pl.program_id(0)

    @pl.when(b == 0)
    def _():
        acc_ref[0] = 0.0

    lp = logs_p_ref[0]
    kl = lp - logs_q_ref[0] - 0.5 \
        + 0.5 * (z_p_ref[0] - mu_p_ref[0]) ** 2 * jnp.exp(-2.0 * lp)
    acc_ref[0] += jnp.sum(kl * mask_ref[0])
    o_ref[0] = acc_ref[0]


def pallas_masked_kl_sum(logs_p, logs_q, z_p, mu_p, mask_b1t):
    B, H, T = logs_p.shape
    f = lambda a: a.astype(jnp.float32)
    out = pl.pallas_call(
        _kl_sum_kernel,
        out_shape=jax.ShapeDtypeStruct((1,), jnp.float32),
        grid=(B,),
        in_specs=[pl.BlockSpec((1, H, T), lambda b: (b, 0, 0)) for _ in range(4)]
        + [pl.BlockSpec((1, 1, T), lambda b: (b, 0, 0))],
        out_specs=pl.BlockSpec(memory_space=pltpu.MemorySpace.SMEM),
        scratch_shapes=[pltpu.SMEM((1,), jnp.float32)],
        compiler_params=pltpu.CompilerParams(
            dimension_semantics=("arbitrary",)),
    )(f(logs_p), f(logs_q), f(z_p), f(mu_p), f(mask_b1t))
    return out[0]


# ----------------------------------------------------------------------------
# Sub-modules
# ----------------------------------------------------------------------------
def sinusoidal_pos_emb(bsz, seq_len, dim, padding_idx=0):
    half = dim // 2
    scale = math.log(10000.0) / (half - 1)
    inv = jnp.exp(jnp.arange(half, dtype=jnp.float32) * -scale)
    pos = jnp.arange(padding_idx + 1, padding_idx + 1 + seq_len, dtype=jnp.float32)
    arg = pos[:, None] * inv[None, :]
    pe = jnp.concatenate([jnp.sin(arg), jnp.cos(arg)], axis=1)
    return jnp.broadcast_to(pe[None], (bsz, seq_len, dim))


def text_encoder_fwd(kp, text, pitch, dur, mel2ph):
    p = kp["text_encoder"]
    emb = p["emb_text"][text] + p["emb_pitch"][pitch] + p["emb_dur"][dur]   # [B,S,H]
    B, S, H = emb.shape
    x = emb.reshape(B * S, H)
    for lyr in p["ffn_layers"]:
        h = pallas_matmul(x, lyr["l1"]["w"], lyr["l1"]["b"], n_out=lyr["l1"]["n"],
                          act="relu", out_dtype=jnp.bfloat16)
        x = pallas_matmul(h, lyr["l2"]["w"], lyr["l2"]["b"], n_out=lyr["l2"]["n"],
                          residual=x)
    x = x.reshape(B, S, H)
    # TODO(synk): the FFT-block multi-head self-attention of the reference text encoder
    # is not reproduced (submodule source not provided); FFN stack retained.
    idx = jnp.clip(mel2ph - 1, 0, S - 1)
    frames = jnp.take_along_axis(x, idx[..., None], axis=1)                 # [B,T,H]
    frames = frames * (mel2ph > 0).astype(jnp.float32)[..., None]
    return jnp.moveaxis(frames, 2, 1)                                       # [B,H,T]


def speaker_embedding(kp, hp, batch, spk_embed=None, spk_id=None):
    g = jnp.zeros((batch, hp["gin_channels"]), jnp.float32)
    if hp["use_spk_embed"]:
        g = g + (spk_embed @ kp["spk_embed_proj_w"] + kp["spk_embed_proj_b"])
    if hp["use_spk_id"]:
        g = g + kp["spk_id_emb"][spk_id]
    return g                                                                # [B, gin]


def pitch_predictor_fwd(kp, x_bht, mask_b1t, g_vec):
    p = kp["pitch_predictor"]
    gcond = g_vec @ p["gw"] + p["gb"]                                       # [B,H]
    out = pallas_conv_stack_head(x_bht, mask_b1t, p["stack"], cond_row=gcond)
    return jnp.moveaxis(out, 1, 2)                                          # [B,T,2]


def frame_prior_fwd(kp, x_bht, mask_b1t, cond_pitch_b1t):
    p = kp["frame_prior"]
    H = x_bht.shape[1]
    cond_scalar = None
    if cond_pitch_b1t is not None:
        cond_scalar = (cond_pitch_b1t, p["cw"], p["cb"])
    stats = pallas_conv_stack_head(x_bht, mask_b1t, p["stack"],
                                   cond_scalar=cond_scalar)                 # [B,2H,T]
    return stats[:, :H, :], stats[:, H:, :]


def posterior_encoder_fwd(kp, mel_bct, mask_b1t, g_vec, rng):
    p = kp["posterior_encoder"]
    H = p["pre"]["wt"].shape[0]
    gcond = g_vec @ p["gw"] + p["gb"]                                       # [B,H]
    # TODO(synk): gated WaveNet dilated stack simplified to a fused residual k=5 stack.
    stats = pallas_conv_stack_head(mel_bct, mask_b1t, p["stack"],
                                   residual_mode=True, pre=p["pre"],
                                   cond_row=gcond)                          # [B,2H,T]
    m_q, logs_q = stats[:, :H, :], stats[:, H:, :]
    eps = jax.random.normal(rng, m_q.shape, jnp.float32)
    z_q = (m_q + eps * jnp.exp(logs_q)) * mask_b1t
    return z_q, m_q, logs_q


def phoneme_predictor_fwd(kp, z_bht, mask_b1t):
    return pallas_conv_stack_head(z_bht, mask_b1t, kp["phoneme_predictor"]["stack"])


def rand_slice_segments(x, segment_size, rng):
    B, C, T = x.shape
    ids = jax.random.randint(rng, (B,), 0, T - segment_size + 1)
    one = lambda xb, i: lax.dynamic_slice_in_dim(xb, i, segment_size, axis=1)
    return jax.vmap(one)(x, ids), ids


# ----------------------------------------------------------------------------
# Top-level VISinger forward (mirrors the PyTorch forward)
# ----------------------------------------------------------------------------
def forward_pitch(kp, hp, pitch_inp, f0, uv, g_vec, tgt_nonpadding, ret):
    # predictor_grad straight-through scaling has no forward-pass effect.
    pitch_pred = pitch_predictor_fwd(kp, pitch_inp, tgt_nonpadding, g_vec)
    ret["f0_pred"] = pitch_pred
    if f0 is None:
        f0 = pitch_pred[:, :, 0]
        v = pitch_pred[:, :, 1] <= 0
    else:
        v = (uv == 0)
    f0 = (f0 * v.astype(jnp.float32))[:, None, :] * tgt_nonpadding
    return f0


def visinger_forward(kp, hp, text_tokens, pitch_tokens, dur_tokens, mel2ph,
                     spk_embed=None, spk_id=None, f0=None, uv=None, mel=None,
                     infer=False, rng=None):
    ret = {}
    tgt_nonpadding = (mel2ph > 0).astype(jnp.float32)[:, None, :]           # [B,1,T]
    prior_inp = text_encoder_fwd(kp, text_tokens, pitch_tokens, dur_tokens, mel2ph)
    prior_inp = prior_inp * tgt_nonpadding
    if hp["use_pos_embed"]:
        B, H, T = prior_inp.shape
        positions = sinusoidal_pos_emb(B, T, H)
        prior_inp = prior_inp + jnp.moveaxis(positions, 2, 1)
    B = prior_inp.shape[0]
    g_vec = speaker_embedding(kp, hp, B, spk_embed, spk_id)                 # [B,gin]
    cond_pitch = None
    if hp["use_pitch_embed"]:
        cond_pitch = forward_pitch(kp, hp, prior_inp, f0, uv, g_vec,
                                   tgt_nonpadding, ret)
    mu_p, logs_p = frame_prior_fwd(kp, prior_inp, tgt_nonpadding, cond_pitch)

    rng_post, rng_slice, rng_infer = jax.random.split(rng, 3)
    if not infer:
        z_q, _, logs_q = posterior_encoder_fwd(kp, jnp.moveaxis(mel, 2, 1),
                                               tgt_nonpadding, g_vec, rng_post)
        if hp["use_phoneme_pred"]:
            # the outer "* tgt_nonpadding" of the reference is fused into the
            # phoneme predictor's in-kernel output head.
            ret["ph_pred"] = phoneme_predictor_fwd(kp, z_q, tgt_nonpadding)
        z_p = pallas_flow(z_q, tgt_nonpadding, kp["flow"], g_vec) * tgt_nonpadding
        ret["z_p"] = z_p
        kl_sum = pallas_masked_kl_sum(logs_p, logs_q, z_p, mu_p, tgt_nonpadding)
        ret["kl"] = kl_sum / jnp.sum(tgt_nonpadding)
        z_slice, ids = rand_slice_segments(z_q, hp["segment_size"], rng_slice)
        ret["ids_slice"] = ids
        wav = pallas_generator(z_slice, kp["decoder"], g_vec)
        ret["wav_out"] = wav[:, 0, :]
    else:
        eps = jax.random.normal(rng_infer, mu_p.shape, jnp.float32)
        z_p = (mu_p + eps * jnp.exp(logs_p)) * tgt_nonpadding
        z_q = pallas_flow(z_p, tgt_nonpadding, kp["flow"], g_vec,
                          reverse=True) * tgt_nonpadding
        wav = pallas_generator(z_q * tgt_nonpadding, kp["decoder"], g_vec)
        ret["wav_out"] = wav[:, 0, :]
    return ret


# ----------------------------------------------------------------------------
# Parameter init (synthetic weights) + one-time kernel-layout preparation
# ----------------------------------------------------------------------------
def init_params(key, hp, ph_dict_size, pitch_size, dur_size):
    H = hp["hidden_size"]; F = hp["ffn_filter_channels"]; G = hp["gin_channels"]
    k = hp["ffn_kernel_size"]
    keys = iter(jax.random.split(key, 256))

    def W(shape, scale=0.1):
        return scale * jax.random.normal(next(keys), shape, jnp.float32)

    Z = lambda *s: jnp.zeros(s, jnp.float32)
    params = {}
    params["spk_id_emb"] = W((hp["num_spk"], G))
    params["text_encoder"] = {
        "emb_text": W((ph_dict_size, H)),
        "emb_pitch": W((pitch_size, H)),
        "emb_dur": W((dur_size, H)),
        "ffn_layers": [{"w1": W((H, F)), "b1": Z(F), "w2": W((F, H)), "b2": Z(H)}
                       for _ in range(hp["enc_layers"])],
    }
    params["pitch_predictor"] = {
        "gw": W((G, H)), "gb": Z(H),
        "stack_w": W((hp["pitch_predictor_layers"], k, H, H)),
        "stack_b": Z(hp["pitch_predictor_layers"], H),
        "ow": W((H, 2)), "ob": Z(2),
    }
    params["frame_prior"] = {
        "gw": W((1, H)), "gb": Z(H),
        "stack_w": W((hp["frame_prior_layers"], k, H, H)),
        "stack_b": Z(hp["frame_prior_layers"], H),
        "ow": W((H, 2 * H)), "ob": Z(2 * H),
    }
    params["posterior_encoder"] = {
        "pre_w": W((hp["num_linear_bins"], H)), "pre_b": Z(H),
        "gw": W((G, H)), "gb": Z(H),
        "stack_w": W((2, 5, H, H)), "stack_b": Z(2, H),
        "proj_w": W((H, 2 * H)), "proj_b": Z(2 * H),
    }
    params["phoneme_predictor"] = {
        "stack_w": W((hp["phoneme_predictor_layers"], k, H, H)),
        "stack_b": Z(hp["phoneme_predictor_layers"], H),
        "ow": W((H, ph_dict_size)), "ob": Z(ph_dict_size),
    }
    half = H // 2
    params["flow"] = {"couplings": [
        {"pre_w": W((half, H)), "pre_b": Z(H),
         "gw": W((G, H)), "gb": Z(H),
         "post_w": jnp.zeros((H, half), jnp.float32), "post_b": Z(half)}
        for _ in range(4)]}
    C0 = hp["initial_upsample_channels"]
    ups, c = [], C0
    for r in hp["upsample_rates"]:
        ups.append({"rate": int(r), "w": W((c, c // 2)), "b": Z(c // 2)})
        c //= 2
    params["decoder"] = {
        "pre_w": W((H, C0)), "pre_b": Z(C0),
        "cond_w": W((G, C0)), "cond_b": Z(C0),
        "ups": ups,
        "post_w": W((c, 1)), "post_b": Z(1),
    }
    return params


def prepare_params(params, hp):
    """One-time conversion to kernel-ready layouts: bf16 MXU operands, transposed
    NCT weights, lane-padded dense weights, channel-flip / sign folding for the flow."""
    H = hp["hidden_size"]
    kp = {"spk_id_emb": params["spk_id_emb"]}

    def dense_pack(w, b):
        K, N = w.shape
        Np = _round_up(N, 128)
        return {"w": jnp.pad(w.astype(jnp.bfloat16), ((0, 0), (0, Np - N))),
                "b": jnp.pad(b.astype(jnp.float32).reshape(1, N),
                             ((0, 0), (0, Np - N))),
                "n": N}

    def conv_stack_pack(sw, sb, ow, ob):
        L, K, Hin, Hout = sw.shape
        wt = jnp.transpose(sw, (0, 3, 1, 2)).reshape(L, Hout, K * Hin)
        return {"wt": wt.astype(jnp.bfloat16),
                "b": sb.reshape(L, Hout, 1).astype(jnp.float32),
                "owt": jnp.transpose(ow).astype(jnp.bfloat16),
                "ob": ob.reshape(-1, 1).astype(jnp.float32),
                "K": int(K), "pad": (int(K) - 1) // 2}

    te = params["text_encoder"]
    kp["text_encoder"] = {
        "emb_text": te["emb_text"], "emb_pitch": te["emb_pitch"],
        "emb_dur": te["emb_dur"],
        "ffn_layers": [{"l1": dense_pack(l["w1"], l["b1"]),
                        "l2": dense_pack(l["w2"], l["b2"])}
                       for l in te["ffn_layers"]],
    }
    pp = params["pitch_predictor"]
    kp["pitch_predictor"] = {
        "gw": pp["gw"], "gb": pp["gb"],
        "stack": conv_stack_pack(pp["stack_w"], pp["stack_b"], pp["ow"], pp["ob"]),
    }
    fp = params["frame_prior"]
    kp["frame_prior"] = {
        "cw": fp["gw"].reshape(-1, 1).astype(jnp.float32),
        "cb": fp["gb"].reshape(-1, 1).astype(jnp.float32),
        "stack": conv_stack_pack(fp["stack_w"], fp["stack_b"], fp["ow"], fp["ob"]),
    }
    pe = params["posterior_encoder"]
    kp["posterior_encoder"] = {
        "gw": pe["gw"], "gb": pe["gb"],
        "pre": {"wt": jnp.transpose(pe["pre_w"]).astype(jnp.bfloat16),
                "b": pe["pre_b"].reshape(-1, 1).astype(jnp.float32)},
        "stack": conv_stack_pack(pe["stack_w"], pe["stack_b"],
                                 pe["proj_w"], pe["proj_b"]),
    }
    ph = params["phoneme_predictor"]
    kp["phoneme_predictor"] = {
        "stack": conv_stack_pack(ph["stack_w"], ph["stack_b"], ph["ow"], ph["ob"]),
    }

    fl = params["flow"]["couplings"]
    n = len(fl)

    def flow_pack(order, fold_on, sign):
        pw, qw, qb, gw, gb = [], [], [], [], []
        for step, ci in enumerate(order):
            lyr = fl[ci]
            pre_t = jnp.transpose(lyr["pre_w"])       # [H, half]
            post_t = jnp.transpose(lyr["post_w"])     # [half, H]
            pb = lyr["post_b"]
            if (step % 2) == fold_on:                 # fold the channel Flip in
                pre_t = pre_t[:, ::-1]
                post_t = post_t[::-1, :]
                pb = pb[::-1]
            pw.append(pre_t.astype(jnp.bfloat16))
            qw.append((sign * post_t).astype(jnp.bfloat16))
            qb.append(sign * pb)
            gw.append(lyr["gw"])
            gb.append(lyr["gb"] + lyr["pre_b"])
        return {"pw": jnp.stack(pw), "qw": jnp.stack(qw),
                "qb": jnp.concatenate(qb).reshape(-1, 1).astype(jnp.float32),
                "gw": jnp.stack(gw), "gb": jnp.stack(gb)}

    kp["flow"] = {
        "H": H, "n_coup": n,
        "fwd": flow_pack(list(range(n)), fold_on=1, sign=1.0),
        "rev": flow_pack(list(reversed(range(n))), fold_on=0, sign=-1.0),
    }

    dec = params["decoder"]
    kp["decoder"] = {
        "pre_wt": jnp.transpose(dec["pre_w"]).astype(jnp.bfloat16),
        "pre_b": dec["pre_b"],
        "cond_w": dec["cond_w"], "cond_b": dec["cond_b"],
        "ups": [{"rate": int(u["rate"]),
                 "wt": jnp.transpose(u["w"]).astype(jnp.bfloat16),
                 "b": u["b"].reshape(-1, 1).astype(jnp.float32)}
                for u in dec["ups"]],
        "post_wt": jnp.transpose(dec["post_w"]).astype(jnp.bfloat16),
        "post_b": dec["post_b"].reshape(1, 1).astype(jnp.float32),
    }
    return kp


# ----------------------------------------------------------------------------
if __name__ == "__main__":
    hp = dict(
        enc_layers=2, dec_blocks=2, hidden_size=32, use_pos_embed=True,
        segment_size=8, num_mel_bins=20, num_linear_bins=20,
        use_spk_id=True, num_spk=4, gin_channels=16, use_spk_embed=False,
        ffn_filter_channels=64, num_heads=2, ffn_kernel_size=3, p_dropout=0.0,
        use_pitch_embed=True, pitch_predictor_layers=2,
        use_phoneme_pred=True, phoneme_predictor_layers=2, frame_prior_layers=2,
        dec_kernel_size=3, dec_dilation_sizes=(1, 3), upsample_rates=(2, 2),
        initial_upsample_channels=32, upsample_kernel_sizes=(4, 4),
        predictor_grad=1.0,
    )
    ph_dict_size, pitch_size, dur_size = 40, 30, 10
    B, S, T = 2, 8, 24  # batch, phoneme-seq, mel frames

    key = jax.random.PRNGKey(0)
    k_text, k_pitch, k_dur, k_m2p, k_f0, k_uv, k_mel = jax.random.split(key, 7)
    text_tokens = jax.random.randint(k_text, (B, S), 1, ph_dict_size)
    pitch_tokens = jax.random.randint(k_pitch, (B, S), 0, pitch_size)
    dur_tokens = jax.random.randint(k_dur, (B, S), 0, dur_size)
    mel2ph = jax.random.randint(k_m2p, (B, T), 1, S + 1)
    pad = (jnp.arange(T)[None, :] >= (T - 4)) & (jnp.arange(B)[:, None] == 1)
    mel2ph = jnp.where(pad, 0, mel2ph)                       # pad tail of item 1
    f0 = jnp.abs(jax.random.normal(k_f0, (B, T))) * 100.0
    uv = jax.random.randint(k_uv, (B, T), 0, 2)
    mel = jax.random.normal(k_mel, (B, T, hp["num_linear_bins"]), jnp.float32)
    spk_id = jnp.array([0, 2], dtype=jnp.int32)

    raw_params = init_params(jax.random.PRNGKey(42), hp, ph_dict_size,
                             pitch_size, dur_size)
    kparams = prepare_params(raw_params, hp)

    up_total = 1
    for r in hp["upsample_rates"]:
        up_total *= int(r)

    # training branch
    ret = visinger_forward(kparams, hp, text_tokens, pitch_tokens, dur_tokens, mel2ph,
                           spk_id=spk_id, f0=f0, uv=uv, mel=mel, infer=False,
                           rng=jax.random.PRNGKey(123))
    jax.block_until_ready(ret)
    assert ret["wav_out"].shape == (B, hp["segment_size"] * up_total)
    assert ret["z_p"].shape == (B, hp["hidden_size"], T)
    assert ret["ph_pred"].shape == (B, ph_dict_size, T)
    assert ret["f0_pred"].shape == (B, T, 2)
    assert ret["kl"].shape == ()

    # inference branch (flow reverse + full-length decode)
    ret_inf = visinger_forward(kparams, hp, text_tokens, pitch_tokens, dur_tokens,
                               mel2ph, spk_id=spk_id, f0=None, uv=None, mel=None,
                               infer=True, rng=jax.random.PRNGKey(321))
    jax.block_until_ready(ret_inf)
    assert ret_inf["wav_out"].shape == (B, T * up_total)
    assert ret_inf["f0_pred"].shape == (B, T, 2)

    print("KERNEL_OK")
</pallas_src>

<mosaic_0001>
module attributes {stable_mosaic.version = 11 : i64} {
  func.func @_mm_kernel(%arg0: i32, %arg1: i32, %arg2: i32, %arg3: memref<16x32xbf16, #tpu.memory_space<vmem>>, %arg4: memref<32x128xbf16, #tpu.memory_space<vmem>>, %arg5: memref<1x128xf32, #tpu.memory_space<vmem>>, %arg6: memref<16x128xbf16, #tpu.memory_space<vmem>>, %arg7: memref<16x128xf32, #tpu.memory_space<vmem>>) attributes {dimension_semantics = [#tpu.dimension_semantics<parallel>, #tpu.dimension_semantics<parallel>, #tpu.dimension_semantics<arbitrary>], iteration_bounds = array<i64: 1, 1, 1>, scalar_prefetch = 0 : i64, scratch_operands = 1 : i64, tpu.core_type = #tpu.core_type<tc>, window_params = [{transform_indices = @transform_0, window_bounds = array<i64: 16, 32>}, {transform_indices = @transform_1, window_bounds = array<i64: 32, 128>}, {transform_indices = @transform_2, window_bounds = array<i64: 1, 128>}, {transform_indices = @transform_3, window_bounds = array<i64: 16, 128>}]} {
    %c0_i32 = arith.constant 0 : i32
    %0 = arith.cmpi eq, %arg2, %c0_i32 : i32
    %1 = arith.extui %0 : i1 to i32
    %c0_i32_0 = arith.constant 0 : i32
    %2 = arith.cmpi ne, %1, %c0_i32_0 : i32
    scf.if %2 {
      %cst_10 = arith.constant 0.000000e+00 : f32
      %12 = vector.broadcast %cst_10 : f32 to vector<16x128xf32>
      %c0_11 = arith.constant 0 : index
      %c0_12 = arith.constant 0 : index
      %13 = vector.load %arg7[%c0_11, %c0_12] : memref<16x128xf32, #tpu.memory_space<vmem>>, vector<16x128xf32>
      tpu.vector_store %arg7[%c0_11, %c0_12], %12 {strides = array<i32>} : memref<16x128xf32, #tpu.memory_space<vmem>>, vector<16x128xf32>,
    } else {
    }
    %c0 = arith.constant 0 : index
    %c0_1 = arith.constant 0 : index
    %3 = vector.load %arg7[%c0, %c0_1] : memref<16x128xf32, #tpu.memory_space<vmem>>, vector<16x128xf32>
    %c0_2 = arith.constant 0 : index
    %c0_3 = arith.constant 0 : index
    %4 = vector.load %arg3[%c0_2, %c0_3] : memref<16x32xbf16, #tpu.memory_space<vmem>>, vector<16x32xbf16>
    %c0_4 = arith.constant 0 : index
    %c0_5 = arith.constant 0 : index
    %5 = vector.load %arg4[%c0_4, %c0_5] : memref<32x128xbf16, #tpu.memory_space<vmem>>, vector<32x128xbf16>
    %cst = arith.constant dense<0.000000e+00> : vector<16x128xf32>
    %6 = tpu.matmul %4, %5, %cst {dimension_numbers = #tpu.dot_dimension_numbers<[1], [0], [0], [1], [0, 0, 1, 1], [], []>} : vector<16x32xbf16>, vector<32x128xbf16>, vector<16x128xf32> -> vector<16x128xf32>
    %7 = arith.addf %3, %6 : vector<16x128xf32>
    %c0_6 = arith.constant 0 : index
    %c0_7 = arith.constant 0 : index
    %8 = vector.load %arg7[%c0_6, %c0_7] : memref<16x128xf32, #tpu.memory_space<vmem>>, vector<16x128xf32>
    tpu.vector_store %arg7[%c0_6, %c0_7], %7 {strides = array<i32>} : memref<16x128xf32, #tpu.memory_space<vmem>>, vector<16x128xf32>,
    %c0_i32_8 = arith.constant 0 : i32
    %9 = arith.cmpi eq, %arg2, %c0_i32_8 : i32
    %10 = arith.extui %9 : i1 to i32
    %c0_i32_9 = arith.constant 0 : i32
    %11 = arith.cmpi ne, %10, %c0_i32_9 : i32
    scf.if %11 {
      %c0_10 = arith.constant 0 : index
      %c0_11 = arith.constant 0 : index
      %12 = vector.load %arg7[%c0_10, %c0_11] : memref<16x128xf32, #tpu.memory_space<vmem>>, vector<16x128xf32>
      %c0_12 = arith.constant 0 : index
      %c0_13 = arith.constant 0 : index
      %13 = vector.load %arg5[%c0_12, %c0_13] : memref<1x128xf32, #tpu.memory_space<vmem>>, vector<1x128xf32>
      %14 = vector.broadcast %13 : vector<1x128xf32> to vector<16x128xf32>
      %15 = arith.addf %12, %14 : vector<16x128xf32>
      %cst_14 = arith.constant 0.000000e+00 : f32
      %16 = vector.broadcast %cst_14 : f32 to vector<16x128xf32>
      %17 = arith.maximumf %15, %16 : vector<16x128xf32>
      %18 = arith.truncf %17 : vector<16x128xf32> to vector<16x128xbf16>
      %c0_15 = arith.constant 0 : index
      %c0_16 = arith.constant 0 : index
      %19 = vector.load %arg6[%c0_15, %c0_16] : memref<16x128xbf16, #tpu.memory_space<vmem>>, vector<16x128xbf16>
      tpu.vector_store %arg6[%c0_15, %c0_16], %18 {strides = array<i32>} : memref<16x128xbf16, #tpu.memory_space<vmem>>, vector<16x128xbf16>,
    } else {
    }
    return
  }
  func.func @transform_0(%arg0: i32, %arg1: i32, %arg2: i32) -> (i32, i32) {
    %c0_i32 = arith.constant 0 : i32
    return %arg0, %arg2 : i32, i32
  }
  func.func @transform_1(%arg0: i32, %arg1: i32, %arg2: i32) -> (i32, i32) {
    %c0_i32 = arith.constant 0 : i32
    return %arg2, %arg1 : i32, i32
  }
  func.func @transform_2(%arg0: i32, %arg1: i32, %arg2: i32) -> (i32, i32) {
    %c0_i32 = arith.constant 0 : i32
    %c0_i32_0 = arith.constant 0 : i32
    return %c0_i32, %arg1 : i32, i32
  }
  func.func @transform_3(%arg0: i32, %arg1: i32, %arg2: i32) -> (i32, i32) {
    %c0_i32 = arith.constant 0 : i32
    return %arg0, %arg1 : i32, i32
  }
}

</mosaic_0001>

<llo_original>
// kernel: tpu_custom_call.1
$region0: #{tpu_custom_call.1}
  #allocation0 [shape = 'u32[]', space=smem, size = 0x4, offset = 0x4, fixed_abs, tag = 'smem constant byte address 0x4 - core index']
  #allocation1 [shape = 'u32[144,128]{1,0:T(1,128)}', space=vmem, size = 0x12000, scoped, tag = 'internal scratch']
  #allocation2 [shape = 'f32[16,128]{1,0:T(8,128)}', space=vmem, size = 0x2000, scoped, tag = 'scratch operand']
  %s0 = inlined_call_operand.hbm [shape: bf16[16,32], index: 0, kind: input, shape index: {}]
  %s1 = inlined_call_operand.hbm [shape: bf16[32,128], index: 1, kind: input, shape index: {}]
  %s2 = inlined_call_operand.vmem [shape: f32[1,128], index: 2, kind: input, shape index: {}]
  %s3 = inlined_call_operand.hbm [shape: bf16[16,128], index: 3, kind: output, shape index: {}]
  %s4 = sld [smem:[#allocation0]]
  $region38: #{tpu_custom_call.1} parent=0
    _
  %s6 = ssub.s32 1, %s4
  %s7 = scalar_select 0, %s6, %s4
  $region1: #{tpu_custom_call.1} parent=0
    #allocation3 [shape = 'u8[4096]{0}', space=vmem, size = 0x1000, scoped, tag = 'input window, operand 0, single buffered']
    #allocation4 [shape = 's32[1]{0}', space=sflag, size = 0x4, scoped, tag = 'scoped memory for tpu_custom_call.1']
    #allocation5 [shape = 's32[1]{0}', space=sflag, size = 0x4, scoped, tag = 'scoped memory for tpu_custom_call.1']
    #allocation6 [shape = 'u8[8192]{0}', space=vmem, size = 0x2000, scoped, tag = 'input window, operand 1, single buffered']
    #allocation7 [shape = 's32[1]{0}', space=sflag, size = 0x4, scoped, tag = 'scoped memory for tpu_custom_call.1']
    #allocation8 [shape = 'u8[4096]{0}', space=vmem, size = 0x1000, scoped, tag = 'output window, operand 0, single buffered']
    %8 = vsyncpa [#allocation4], 0
    %9 = vsyncpa [#allocation7], 0
    %10 = vsyncpa [#allocation5], 0
    // Predicated region
    $region2: #{tpu_custom_call.1} parent=1 // pred_check
      _
    $region3: #{tpu_custom_call.1} parent=1 // pred_check_branch
      %12 = sbr.rel (0) target = $region5
    $region4: #{tpu_custom_call.1} parent=1 // pred_region
      %s14 = ssub.s32 128, 128
      %15 = vsyncadd [#allocation4], %s14
      %s16 = sshll.u32 [#allocation3], 4
      %s17 = int_to_ptr.vmem [resolvable:$true] %s16
      %22 = dma.hbm_to_vmem [thread:$0]  %s0, 128, %s17, [#allocation4], 64, 64, 4
    $region5: #{tpu_custom_call.1} parent=1 // pred_fallthru
      _
    // Predicated region
    $region6: #{tpu_custom_call.1} parent=1 // pred_check
      _
    $region7: #{tpu_custom_call.1} parent=1 // pred_check_branch
      %24 = sbr.rel (0) target = $region9
    $region8: #{tpu_custom_call.1} parent=1 // pred_region
      %s26 = ssub.s32 256, 256
      %27 = vsyncadd [#allocation7], %s26
      %s28 = sshll.u32 [#allocation6], 4
      %s29 = int_to_ptr.vmem [resolvable:$true] %s28
      %34 = dma.hbm_to_vmem [thread:$0]  %s1, 256, %s29, [#allocation7], 64, 64, 4
    $region9: #{tpu_custom_call.1} parent=1 // pred_fallthru
      _
    // Predicated region
    $region10: #{tpu_custom_call.1} parent=1 // pred_check
      _
    $region11: #{tpu_custom_call.1} parent=1 // pred_check_branch
      %36 = sbr.rel (0) target = $region13
    $region12: #{tpu_custom_call.1} parent=1 // pred_region
      _
    $region13: #{tpu_custom_call.1} parent=1 // pred_fallthru
      _
    // Predicated region
    $region14: #{tpu_custom_call.1} parent=1 // pred_check
      _
    $region15: #{tpu_custom_call.1} parent=1 // pred_check_branch
      %38 = sbr.rel (0) target = $region17
    $region16: #{tpu_custom_call.1} parent=1 // pred_region
      %39 = dma.done [#allocation4], 128
    $region17: #{tpu_custom_call.1} parent=1 // pred_fallthru
      _
    // Predicated region
    $region18: #{tpu_custom_call.1} parent=1 // pred_check
      _
    $region19: #{tpu_custom_call.1} parent=1 // pred_check_branch
      %41 = sbr.rel (0) target = $region21
    $region20: #{tpu_custom_call.1} parent=1 // pred_region
      %42 = dma.done [#allocation7], 256
    $region21: #{tpu_custom_call.1} parent=1 // pred_fallthru
      _
    %p44 = scmp.eq.s32.totalorder 0, 0
    // Predicated region
    $region22: #{tpu_custom_call.1} parent=1 // pred_check
      %p45 = pneg %p44
    $region23: #{tpu_custom_call.1} parent=1 // pred_check_branch
      %47 = sbr.rel (%p45) target = $region25
    $region24: #{tpu_custom_call.1} parent=1 // pred_region
      %48 = vst [vmem:[#allocation2] sm:$0xff] 0.0
      %49 = vst [vmem:[#allocation2 + $0x8] sm:$0xff] 0.0
    $region25: #{tpu_custom_call.1} parent=1 // pred_fallthru
      _
    %v50 = vld [vmem:[#allocation2] sm:$0xff]
    %v51 = vld [vmem:[#allocation2 + $0x8] sm:$0xff]
    %v52 = vld [vmem:[#allocation3] sm:$0xf]
    %v53 = vld [vmem:[#allocation3 + $0x4] sm:$0xf]
    %v54 = vld [vmem:[#allocation6] sm:$0xf]
    %v55 = vld [vmem:[#allocation6 + $0x4] sm:$0xf]
    %v56 = vld [vmem:[#allocation6 + $0x8] sm:$0xf]
    %v57 = vld [vmem:[#allocation6 + $0xc] sm:$0xf]
    %v60 = vunpack.c.l.b16 %v52
    %v61 = vunpack.c.l.b16 %v53
    %v62 = vpack.c.b16 %v61, %v60
    %v67 = vunpack.c.l.b16 %v54
    %v68 = vunpack.c.l.b16 %v55
    %v69 = vunpack.c.l.b16 %v56
    %v70 = vunpack.c.l.b16 %v57
    %v71 = vpack.c.b16 %v68, %v67
    %v72 = vpack.c.b16 %v70, %v69
    %vm75 = vcmask 261120
    %v77 = vsel %vm75, %v62, 0
    %79 = vmatprep.subr.bf16.mxu0 0
    %80 = vmatpush1.bf16.msra.mxu0 %v71
    %81 = vmatprep.subr.bf16.mxu0 0
    %82 = vmatpush1.bf16.msra.mxu0 %v72
    %83 = vmatprep.subr.bf16.mxu0 0
    %84 = vmatpush1.bf16.msra.mxu0 0
    %85 = vmatprep.subr.bf16.mxu0 0
    %86 = vmatpush1.bf16.msra.mxu0 0
    %87 = vmatprep.subr.bf16.mxu0 0
    %88 = vmatpush1.bf16.msra.mxu0 0
    %89 = vmatprep.subr.bf16.mxu0 0
    %90 = vmatpush1.bf16.msra.mxu0 0
    %91 = vmatprep.subr.bf16.mxu0 0
    %92 = vmatpush1.bf16.msra.mxu0 0
    %93 = vmatprep.subr.bf16.mxu0 0
    %94 = vmatpush1.bf16.msra.mxu0 0
    %95 = vmatprep.subr.bf16.mxu0 0
    %96 = vmatpush1.bf16.msra.mxu0 0
    %97 = vmatprep.subr.bf16.mxu0 0
    %98 = vmatpush1.bf16.msra.mxu0 0
    %99 = vmatprep.subr.bf16.mxu0 0
    %100 = vmatpush1.bf16.msra.mxu0 0
    %101 = vmatprep.subr.bf16.mxu0 0
    %102 = vmatpush1.bf16.msra.mxu0 0
    %103 = vmatprep.subr.bf16.mxu0 0
    %104 = vmatpush1.bf16.msra.mxu0 0
    %105 = vmatprep.subr.bf16.mxu0 0
    %106 = vmatpush1.bf16.msra.mxu0 0
    %107 = vmatprep.subr.bf16.mxu0 0
    %108 = vmatpush1.bf16.msra.mxu0 0
    %109 = vmatprep.subr.bf16.mxu0 0
    %110 = vmatpush1.bf16.msra.mxu0 0
    %111 = vmatprep.mubr.bf16.mxu0 0
    %112 = vmatmul.mubr.bf16.gmra.mrb[0].mxu0 %v77
    %v113 = vpop.f32.mrb[0].mxu0
    %v114 = vadd.f32 0.0, %v113
    %v115 = vpop.f32.mrb[0].mxu0
    %v116 = vpop.f32.mrb[0].mxu0
    %v117 = vadd.f32 0.0, %v116
    %v118 = vpop.f32.mrb[0].mxu0
    %119 = vdwg.mxu0
    %v120 = vadd.f32 %v50, %v114
    %v121 = vadd.f32 %v51, %v117
    %122 = vst [vmem:[#allocation2] sm:$0xff] %v120
    %123 = vst [vmem:[#allocation2 + $0x8] sm:$0xff] %v121
    // Predicated region
    $region26: #{tpu_custom_call.1} parent=1 // pred_check
      %p124 = pneg %p44
    $region27: #{tpu_custom_call.1} parent=1 // pred_check_branch
      %126 = sbr.rel (%p124) target = $region29
    $region28: #{tpu_custom_call.1} parent=1 // pred_region
      %v127 = vld [vmem:[#allocation2] sm:$0xff]
      %v128 = vld [vmem:[#allocation2 + $0x8] sm:$0xff]
      %v129 = vld [vmem:[%s2] sm:$0x1]
      %v131 = vlaneseq
      %v132 = vshrl.u32 %v131, 7
      %v133 = vsub.s32 0, %v132
      %v134 = vrot.slane %v129, %v133
      %v136 = vadd.f32 %v127, %v134
      %v137 = vadd.f32 %v128, %v134
      %v138 = vmax.f32 %v136, 0.0
      %v139 = vmax.f32 %v137, 0.0
      %v140 = vpack.c.bf16 %v139, %v138
      %v142 = vunpack.c.l.b16 %v140
      %v143 = vunpack.c.h.b16 %v140
      %v144 = vpack.c.b16 %v142, %v142
      %v145 = vpack.c.b16 %v143, %v143
      %148 = vst [vmem:[#allocation8] sm:$0xf] %v144
      %149 = vst [vmem:[#allocation8 + $0x4] sm:$0xf] %v145
    $region29: #{tpu_custom_call.1} parent=1 // pred_fallthru
      _
    // Predicated region
    $region30: #{tpu_custom_call.1} parent=1 // pred_check
      _
    $region31: #{tpu_custom_call.1} parent=1 // pred_check_branch
      %151 = sbr.rel (0) target = $region33
    $region32: #{tpu_custom_call.1} parent=1 // pred_region
      %s153 = ssub.s32 128, 128
      %154 = vsyncadd [#allocation5], %s153
      %s155 = sshll.u32 [#allocation8], 4
      %s156 = int_to_ptr.vmem [resolvable:$true] %s155
      %161 = dma.vmem_to_hbm [thread:$0]  %s156, 128, %s3, [#allocation5], 64, 64, 4
    $region33: #{tpu_custom_call.1} parent=1 // pred_fallthru
      _
    // Predicated region
    $region34: #{tpu_custom_call.1} parent=1 // pred_check
      _
    $region35: #{tpu_custom_call.1} parent=1 // pred_check_branch
      %163 = sbr.rel (0) target = $region37
    $region36: #{tpu_custom_call.1} parent=1 // pred_region
      %164 = dma.done [#allocation5], 128
    $region37: #{tpu_custom_call.1} parent=1 // pred_fallthru
      _
    %165 = vsyncpa [#allocation4], 1
    %166 = vsyncpa [#allocation7], 1
    %167 = vsyncpa [#allocation5], 1

</llo_original>
